<compile_context>
chip_gen: v6e
topology: v6e:2x2x1
jax: 0.10.0
libtpu: 0.0.40
codegen_flags: <defaults>
</compile_context>

<pallas_src>
import functools

import jax
import jax.numpy as jnp
from jax import lax
from jax.experimental import pallas as pl
from jax.experimental.pallas import tpu as pltpu


def _fused_conv_kernel(a_ref, w_ref, o_ref, *, th, wo, activation):
    """One (image, row-tile, cout-block) step of the fused conv + activation.

    a_ref: (1, 1, th+1, Wo, F)  bf16  pre-tiled input rows + one-row halo,
                                      F = 8*Cin channels ordered (dw, di, dj, c)
    w_ref: (2, F, cb)           bf16  per-dh weight matrices (constant block)
    o_ref: (1, th, Wo, cb)      bf16  output tile (lane-dense, cb % 128 == 0)
    """
    f = a_ref.shape[-1]
    a = a_ref[0, 0]                                    # (th+1, Wo, F)
    # Contiguous major-axis row windows -> view reshapes, no VMEM copies.
    top = a[:th].reshape(th * wo, f)                   # dh = 0 rows
    bot = a[1:th + 1].reshape(th * wo, f)              # dh = 1 rows
    acc = jnp.dot(top, w_ref[0], preferred_element_type=jnp.float32)
    acc = acc + jnp.dot(bot, w_ref[1], preferred_element_type=jnp.float32)
    if activation == "relu":
        acc = jnp.maximum(acc, 0.0)
    else:  # leaky_relu(0.2)
        acc = jnp.where(acc >= 0.0, acc, 0.2 * acc)
    o_ref[...] = acc.reshape(o_ref.shape).astype(o_ref.dtype)


def _vmem_budget_bytes():
    """Generation-aware scoped-VMEM budget (perf review: use 64-96 MiB on the
    128-MiB v5e/v6e parts, ~32-40 MiB on 64-MiB-per-core v7x)."""
    cap = 64 * 1024 * 1024
    try:
        cap = int(pltpu.get_tpu_info().vmem_capacity_bytes)
    except Exception:  # CPU tracing / older API: stay conservative.
        pass
    if cap >= 128 * 1024 * 1024:
        return 80 * 1024 * 1024          # v5e / v6e
    return 36 * 1024 * 1024              # v7x


def _pick_tiles(n, ho, wo, f, coutp, budget):
    """Pick (row-tile th, cout-block cb).

    Targets ~4096 output rows per grid step (amortizes ~0.35us/step overhead),
    keeps the per-step footprint (double-buffered input/output/weight blocks
    + f32 accumulator + relayout slack) under `budget`, and splits Cout when
    the (N, row) grid alone would be too small for two TensorCores / the DMA
    pipeline (v7x) or when the resident weight block would be large.
    """
    th = max(1, min(ho, pl.cdiv(4096, wo)))
    cb = coutp
    wgt2 = 2 * (2 * f * coutp * 2)            # double-buffered (2, F, Coutp) bf16
    if coutp > 128 and (n * pl.cdiv(ho, th) < 8 or wgt2 > budget // 4):
        cb = 256 if coutp % 256 == 0 else 128

    def step_bytes(t):
        inp = (t + 1) * wo * f * 2            # bf16 input window (+1 halo row)
        out = t * wo * cb * 2                 # bf16 output tile
        wgt = 2 * f * cb * 2                  # bf16 weight block
        acc = t * wo * cb * 4                 # f32 accumulator
        tmp = 2 * t * wo * f * 2              # slack for possible relayouts
        return 2 * (inp + out + wgt) + acc + tmp

    while th > 1 and step_bytes(th) > budget:
        th -= 1
    return th, cb


def cnn_block2_downsample(x_nchw, w_oihw, activation="relu",
                          compute_dtype=jnp.bfloat16):
    """Conv2d(k=4, s=2, p=1, reflect pad, no bias) + ReLU / LeakyReLU(0.2).

    x_nchw: (N, Cin, H, W)   w_oihw: (Cout, Cin, 4, 4)  -> (N, Cout, H//2, W//2)

    Operands and the kernel output are bf16 (f32 accumulation), so results
    match a bf16-rounded conv to ~1 bf16 ulp rather than bit-exact fp32.
    """
    if activation not in ("relu", "leaky_relu"):
        raise ValueError("Activation should be 'leaky_relu' or 'relu'.")
    N, Cin, H, W = x_nchw.shape
    Cout = w_oihw.shape[0]
    assert H % 2 == 0 and W % 2 == 0, "stride-2 block expects even spatial dims"
    Ho, Wo = H // 2, W // 2
    Hsd, Wsd = Ho + 1, Wo + 1            # space-to-depth dims of padded input
    F = 8 * Cin                          # (dw, di, dj, c) folded channels
    Coutp = ((Cout + 127) // 128) * 128  # lane-dense output channels
    # TODO(synk): tiny-Cin layers (e.g. an RGB stem, F = 24) underfill the 128
    # lanes / MXU K; route those to the XLA conv or pack W positions into lanes.

    # ---- wrapper-side layout (one fused XLA pass over the input) ----
    #   sd [n, p, q, (di, dj, c)]      = x_pad[n, 2p + di, 2q + dj, c]
    #   sdw[n, p, j, (dw, di, dj, c)]  = sd[n, p, j + dw, (di, dj, c)]
    # so the stride-2 4x4 conv becomes, per output row i:
    #   out[i] = sdw[i] @ W2[0] + sdw[i + 1] @ W2[1]
    x = jnp.transpose(x_nchw, (0, 2, 3, 1))
    x_p = jnp.pad(x, ((0, 0), (1, 1), (1, 1), (0, 0)), mode="reflect")
    sd = x_p.reshape(N, Hsd, 2, Wsd, 2, Cin)
    sd = jnp.transpose(sd, (0, 1, 3, 2, 4, 5)).reshape(N, Hsd, Wsd, 4 * Cin)
    sdw = jnp.concatenate([sd[:, :, :Wo, :], sd[:, :, 1:, :]], axis=-1)
    sdw = sdw.astype(compute_dtype)      # (N, Hsd, Wo, F)

    budget = _vmem_budget_bytes()
    th, cb = _pick_tiles(N, Ho, Wo, F, Coutp, budget)
    n_rt = pl.cdiv(Ho, th)
    n_cb = Coutp // cb

    # Pre-tile (th+1)-row overlapping windows so a single BlockSpec DMA brings
    # the one-row halo (no in-kernel concatenate).  Duplicates 1 row per tile.
    rows_needed = n_rt * th + 1
    if rows_needed > Hsd:                # cdiv row tiling: pad, slice out later
        sdw = jnp.pad(sdw, ((0, 0), (0, rows_needed - Hsd), (0, 0), (0, 0)))
    main = sdw[:, :n_rt * th].reshape(N, n_rt, th, Wo, F)
    halo = sdw[:, th:rows_needed:th].reshape(N, n_rt, 1, Wo, F)
    sdt = jnp.concatenate([main, halo], axis=2)        # (N, n_rt, th+1, Wo, F)

    # Weight (Cout, Cin, 4, 4) -> (2, F, Coutp): per-dh (F x Cout) matrices in
    # the same (dw, di, dj, c) channel order as sdw; zero-padded to 128 lanes.
    w = w_oihw.reshape(Cout, Cin, 2, 2, 2, 2)          # (co, c, dh, di, dw, dj)
    w = jnp.transpose(w, (2, 4, 3, 5, 1, 0))           # (dh, dw, di, dj, c, co)
    w = w.reshape(2, F, Cout).astype(compute_dtype)
    if Coutp != Cout:
        w = jnp.pad(w, ((0, 0), (0, 0), (0, Coutp - Cout)))
    # TODO(synk): single-buffer this constant-index weight block
    # (pipeline_mode=pl.Buffered(1) / one-shot DMA into scratch) to return its
    # second VMEM buffer on the 512-channel layers.

    kernel = functools.partial(_fused_conv_kernel, th=th, wo=Wo,
                               activation=activation)

    out = pl.pallas_call(
        kernel,
        out_shape=jax.ShapeDtypeStruct((N, n_rt * th, Wo, Coutp), compute_dtype),
        grid=(N, n_rt, n_cb),
        in_specs=[
            pl.BlockSpec((1, 1, th + 1, Wo, F), lambda n, r, c: (n, r, 0, 0, 0)),
            pl.BlockSpec((2, F, cb), lambda n, r, c: (0, 0, c)),
        ],
        out_specs=pl.BlockSpec((1, th, Wo, cb), lambda n, r, c: (n, r, 0, c)),
        compiler_params=pltpu.CompilerParams(
            dimension_semantics=("parallel", "parallel", "parallel"),
            vmem_limit_bytes=int(budget)),
    )(sdt, w)

    out = out[:, :Ho, :, :Cout]          # drop row / lane padding (bf16 data)
    # TODO(synk): if downstream consumes NHWC/bf16, return `out` here and skip
    # this NCHW transpose (pure layout plumbing for the PyTorch interface).
    return jnp.transpose(out, (0, 3, 1, 2)).astype(x_nchw.dtype)


def _reference(x_nchw, w_oihw, activation="relu", compute_dtype=jnp.bfloat16):
    # Pure-JAX reference: f32 conv on bf16-rounded operands.
    x = jnp.transpose(x_nchw, (0, 2, 3, 1)).astype(compute_dtype).astype(jnp.float32)
    w = w_oihw.astype(compute_dtype).astype(jnp.float32)
    x_p = jnp.pad(x, ((0, 0), (1, 1), (1, 1), (0, 0)), mode="reflect")
    w_hwio = jnp.transpose(w, (2, 3, 1, 0))
    y = lax.conv_general_dilated(
        x_p, w_hwio, window_strides=(2, 2), padding="VALID",
        dimension_numbers=("NHWC", "HWIO", "NHWC"),
        precision=lax.Precision.HIGHEST)
    if activation == "relu":
        y = jnp.maximum(y, 0.0)
    else:
        y = jnp.where(y >= 0.0, y, 0.2 * y)
    return jnp.transpose(y, (0, 3, 1, 2)).astype(x_nchw.dtype)


if __name__ == "__main__":
    key = jax.random.PRNGKey(0)
    kx, kw = jax.random.split(key)

    N, Cin, H, W = 2, 4, 16, 16
    Cout = 8

    x = jax.random.normal(kx, (N, Cin, H, W), dtype=jnp.float32)
    # Deterministic synthetic weight, roughly Kaiming-scaled.
    w = jax.random.normal(kw, (Cout, Cin, 4, 4), dtype=jnp.float32) * 0.1

    y = cnn_block2_downsample(x, w, activation="relu")
    y = jax.block_until_ready(y)

    y_ref = _reference(x, w, activation="relu")
    assert y.shape == (N, Cout, H // 2, W // 2), y.shape
    # Tolerance covers the kernel's bf16 output rounding (~1 bf16 ulp) on top
    # of bf16-operand / f32-accumulate matmul differences.
    assert jnp.allclose(y, y_ref, atol=2e-2, rtol=2e-2), float(
        jnp.max(jnp.abs(y - y_ref)))

    print("KERNEL_OK")
</pallas_src>

<mosaic_0001>
module attributes {stable_mosaic.version = 11 : i64} {
  func.func @_fused_conv_kernel(%arg0: i32, %arg1: i32, %arg2: i32, %arg3: memref<1x1x9x8x32xbf16, #tpu.memory_space<vmem>>, %arg4: memref<2x32x128xbf16, #tpu.memory_space<vmem>>, %arg5: memref<1x8x8x128xbf16, #tpu.memory_space<vmem>>) attributes {dimension_semantics = [#tpu.dimension_semantics<parallel>, #tpu.dimension_semantics<parallel>, #tpu.dimension_semantics<parallel>], iteration_bounds = array<i64: 2, 1, 1>, scalar_prefetch = 0 : i64, scratch_operands = 0 : i64, tpu.core_type = #tpu.core_type<tc>, window_params = [{transform_indices = @transform_0, window_bounds = array<i64: 1, 1, 9, 8, 32>}, {transform_indices = @transform_1, window_bounds = array<i64: 2, 32, 128>}, {transform_indices = @transform_2, window_bounds = array<i64: 1, 8, 8, 128>}]} {
    %c0 = arith.constant 0 : index
    %c0_0 = arith.constant 0 : index
    %c0_1 = arith.constant 0 : index
    %c0_2 = arith.constant 0 : index
    %c0_3 = arith.constant 0 : index
    %0 = vector.load %arg3[%c0, %c0_0, %c0_1, %c0_2, %c0_3] : memref<1x1x9x8x32xbf16, #tpu.memory_space<vmem>>, vector<1x1x9x8x32xbf16>
    %1 = vector.shape_cast %0 : vector<1x1x9x8x32xbf16> to vector<9x8x32xbf16>
    %2 = vector.extract_strided_slice %1 {offsets = [0, 0, 0], sizes = [8, 8, 32], strides = [1, 1, 1]} : vector<9x8x32xbf16> to vector<8x8x32xbf16>
    %3 = vector.shape_cast %2 : vector<8x8x32xbf16> to vector<64x32xbf16>
    %4 = vector.extract_strided_slice %1 {offsets = [1, 0, 0], sizes = [8, 8, 32], strides = [1, 1, 1]} : vector<9x8x32xbf16> to vector<8x8x32xbf16>
    %5 = vector.shape_cast %4 : vector<8x8x32xbf16> to vector<64x32xbf16>
    %c0_4 = arith.constant 0 : index
    %c0_5 = arith.constant 0 : index
    %c0_6 = arith.constant 0 : index
    %6 = vector.load %arg4[%c0_4, %c0_5, %c0_6] : memref<2x32x128xbf16, #tpu.memory_space<vmem>>, vector<1x32x128xbf16>
    %7 = vector.shape_cast %6 : vector<1x32x128xbf16> to vector<32x128xbf16>
    %cst = arith.constant dense<0.000000e+00> : vector<64x128xf32>
    %8 = tpu.matmul %3, %7, %cst {dimension_numbers = #tpu.dot_dimension_numbers<[1], [0], [0], [1], [0, 0, 1, 1], [], []>} : vector<64x32xbf16>, vector<32x128xbf16>, vector<64x128xf32> -> vector<64x128xf32>
    %c1 = arith.constant 1 : index
    %c0_7 = arith.constant 0 : index
    %c0_8 = arith.constant 0 : index
    %9 = vector.load %arg4[%c1, %c0_7, %c0_8] : memref<2x32x128xbf16, #tpu.memory_space<vmem>>, vector<1x32x128xbf16>
    %10 = vector.shape_cast %9 : vector<1x32x128xbf16> to vector<32x128xbf16>
    %cst_9 = arith.constant dense<0.000000e+00> : vector<64x128xf32>
    %11 = tpu.matmul %5, %10, %cst_9 {dimension_numbers = #tpu.dot_dimension_numbers<[1], [0], [0], [1], [0, 0, 1, 1], [], []>} : vector<64x32xbf16>, vector<32x128xbf16>, vector<64x128xf32> -> vector<64x128xf32>
    %12 = arith.addf %8, %11 : vector<64x128xf32>
    %cst_10 = arith.constant 0.000000e+00 : f32
    %13 = vector.broadcast %cst_10 : f32 to vector<64x128xf32>
    %14 = arith.maximumf %12, %13 : vector<64x128xf32>
    %15 = vector.shape_cast %14 : vector<64x128xf32> to vector<1x8x8x128xf32>
    %16 = arith.truncf %15 : vector<1x8x8x128xf32> to vector<1x8x8x128xbf16>
    %c0_11 = arith.constant 0 : index
    %c0_12 = arith.constant 0 : index
    %c0_13 = arith.constant 0 : index
    %c0_14 = arith.constant 0 : index
    %17 = vector.load %arg5[%c0_11, %c0_12, %c0_13, %c0_14] : memref<1x8x8x128xbf16, #tpu.memory_space<vmem>>, vector<1x8x8x128xbf16>
    tpu.vector_store %arg5[%c0_11, %c0_12, %c0_13, %c0_14], %16 {strides = array<i32>} : memref<1x8x8x128xbf16, #tpu.memory_space<vmem>>, vector<1x8x8x128xbf16>,
    return
  }
  func.func @transform_0(%arg0: i32, %arg1: i32, %arg2: i32) -> (i32, i32, i32, i32, i32) {
    %c0_i32 = arith.constant 0 : i32
    %c0_i32_0 = arith.constant 0 : i32
    %c0_i32_1 = arith.constant 0 : i32
    %c0_i32_2 = arith.constant 0 : i32
    return %arg0, %arg1, %c0_i32, %c0_i32_0, %c0_i32_1 : i32, i32, i32, i32, i32
  }
  func.func @transform_1(%arg0: i32, %arg1: i32, %arg2: i32) -> (i32, i32, i32) {
    %c0_i32 = arith.constant 0 : i32
    %c0_i32_0 = arith.constant 0 : i32
    %c0_i32_1 = arith.constant 0 : i32
    return %c0_i32, %c0_i32_0, %arg2 : i32, i32, i32
  }
  func.func @transform_2(%arg0: i32, %arg1: i32, %arg2: i32) -> (i32, i32, i32, i32) {
    %c0_i32 = arith.constant 0 : i32
    %c0_i32_0 = arith.constant 0 : i32
    return %arg0, %arg1, %c0_i32, %arg2 : i32, i32, i32, i32
  }
}

</mosaic_0001>

<llo_original>
// kernel: tpu_custom_call.1
$region0: #{tpu_custom_call.1}
  #allocation0 [shape = 'u32[]', space=smem, size = 0x4, offset = 0x4, fixed_abs, tag = 'smem constant byte address 0x4 - core index']
  #allocation1 [shape = 'u32[144,128]{1,0:T(1,128)}', space=vmem, size = 0x12000, scoped, tag = 'internal scratch']
  %s0 = inlined_call_operand.hbm [shape: bf16[2,1,9,8,32], index: 0, kind: input, shape index: {}]
  %s1 = inlined_call_operand.hbm [shape: bf16[2,32,128], index: 1, kind: input, shape index: {}]
  %s2 = inlined_call_operand.hbm [shape: bf16[2,8,8,128], index: 2, kind: output, shape index: {}]
  %s3 = sld [smem:[#allocation0]]
  $region49: #{tpu_custom_call.1} parent=0
    _
  %s5 = ssub.s32 1, %s3
  %s6 = scalar_select 0, %s5, %s3
  $region1: #{tpu_custom_call.1} parent=0
    #allocation2 [shape = 'u8[36864]{0}', space=vmem, size = 0x9000, scoped, tag = 'input window, operand 0']
    #allocation3 [shape = 's32[2]{0}', space=sflag, size = 0x8, scoped, tag = 'scoped memory for tpu_custom_call.1']
    #allocation4 [shape = 's32[2]{0}', space=sflag, size = 0x8, scoped, tag = 'scoped memory for tpu_custom_call.1']
    #allocation5 [shape = 'u8[16384]{0}', space=vmem, size = 0x4000, scoped, tag = 'input window, operand 1, single buffered']
    #allocation6 [shape = 's32[1]{0}', space=sflag, size = 0x4, scoped, tag = 'scoped memory for tpu_custom_call.1']
    #allocation7 [shape = 'u8[32768]{0}', space=vmem, size = 0x8000, scoped, tag = 'output window, operand 0']
    %7 = vsyncpa [#allocation3], 0
    %s8 = scalar_lea.sflag [#allocation3], 1
    %9 = vsyncpa %s8, 0
    %10 = vsyncpa [#allocation6], 0
    %11 = vsyncpa [#allocation4], 0
    %s12 = scalar_lea.sflag [#allocation4], 1
    %13 = vsyncpa %s12, 0
    loop: start=0, step=1, limit=4
    $region2: #{tpu_custom_call.1} parent=1 // loop_pre_header
      _
    $region3: #{tpu_custom_call.1} parent=1 // loop_header
      %s15 = sphi 0, %s19
      %p16 = scmp.ge.s32.totalorder %s15, 4
      %s22 = sphi 0, %s41
      %s23 = sphi 0, %s37
      %s24 = sphi 0, %s33
      %s25 = sphi 0, %s22
      %s26 = sphi 0, %s23
      %s27 = sphi 0, %s24
      %s28 = sphi 0, %s25
      %s29 = sphi 0, %s26
      %s30 = sphi 0, %s27
      %s46 = sphi 0, %s48
      %s49 = sphi 0, %s46
      %s50 = sphi 0, %s49
      %s66 = sphi 0, %s50
      %s72 = sphi 0, %s74
      %s75 = sphi 0, %s72
      %s76 = sphi 0, %s75
      %s92 = sphi 0, %s76
      %s102 = sphi 0, %s104
      %s105 = sphi 0, %s102
      %s106 = sphi 0, %s105
      %s122 = sphi 0, %s106
    $region4: #{tpu_custom_call.1} parent=1 // loop_header_branch
      %18 = sbr.rel (%p16) target = $region8
    $region5: #{tpu_custom_call.1} parent=1 // loop_body
      %s20 = ssub.s32 %s15, 1
      %s21 = ssub.s32 %s15, 2
      %s31 = sadd.s32 1, %s24
      %p32 = scmp.ge.s32.totalorder %s31, 1
      %s33 = scalar_select %p32, 0, %s31
      %s34 = sadd.s32 1, %s23
      %s35 = scalar_select %p32, %s34, %s23
      %p36 = scmp.ge.s32.totalorder %s35, 1
      %s37 = scalar_select %p36, 0, %s35
      %s38 = sadd.s32 1, %s22
      %s39 = scalar_select %p36, %s38, %s22
      %p40 = scmp.ge.s32.totalorder %s39, 2
      %s41 = scalar_select %p40, 0, %s39
      %s42 = ssub.s32 %s22, %s41
      %s43 = ssub.s32 %s23, %s37
      %s44 = sor.u32 %s42, %s43
      %p45 = scmp.eq.s32.totalorder %s44, 0
      %s47 = sadd.s32 %s46, 1
      %s48 = scalar_select %p45, %s46, %s47
      %p51 = pneg %p45
      %p52 = scmp.eq.s32.totalorder %s15, 1
      %p53 = por %p51, %p52
      %p54 = scmp.ne.s32.totalorder %s46, %s49
      %p55 = scmp.eq.s32.totalorder %s15, 0
      %p56 = por %p54, %p55
      %p57 = scmp.ne.s32.totalorder %s46, %s49
      %p58 = scmp.eq.s32.totalorder %s20, 1
      %p59 = por %p57, %p58
      %p60 = scmp.ne.s32.totalorder %s49, %s50
      %p61 = scmp.eq.s32.totalorder %s20, 0
      %p62 = por %p60, %p61
      %p63 = scmp.ne.s32.totalorder %s49, %s50
      %p64 = scmp.eq.s32.totalorder %s21, 1
      %p65 = por %p63, %p64
      %p67 = scmp.ne.s32.totalorder %s50, %s66
      %p68 = scmp.eq.s32.totalorder %s21, 0
      %p69 = por %p67, %p68
      %s70 = ssub.s32 %s24, %s33
      %p71 = scmp.eq.s32.totalorder %s70, 0
      %s73 = sadd.s32 %s72, 1
      %s74 = scalar_select %p71, %s72, %s73
      %p77 = pneg %p71
      %p78 = scmp.eq.s32.totalorder %s15, 1
      %p79 = por %p77, %p78
      %p80 = scmp.ne.s32.totalorder %s72, %s75
      %p81 = scmp.eq.s32.totalorder %s15, 0
      %p82 = por %p80, %p81
      %p83 = scmp.ne.s32.totalorder %s72, %s75
      %p84 = scmp.eq.s32.totalorder %s20, 1
      %p85 = por %p83, %p84
      %p86 = scmp.ne.s32.totalorder %s75, %s76
      %p87 = scmp.eq.s32.totalorder %s20, 0
      %p88 = por %p86, %p87
      %p89 = scmp.ne.s32.totalorder %s75, %s76
      %p90 = scmp.eq.s32.totalorder %s21, 1
      %p91 = por %p89, %p90
      %p93 = scmp.ne.s32.totalorder %s76, %s92
      %p94 = scmp.eq.s32.totalorder %s21, 0
      %p95 = por %p93, %p94
      %s96 = ssub.s32 %s22, %s41
      %s97 = ssub.s32 %s23, %s37
      %s98 = sor.u32 %s96, %s97
      %s99 = ssub.s32 %s24, %s33
      %s100 = sor.u32 %s98, %s99
      %p101 = scmp.eq.s32.totalorder %s100, 0
      %s103 = sadd.s32 %s102, 1
      %s104 = scalar_select %p101, %s102, %s103
      %p107 = pneg %p101
      %p108 = scmp.eq.s32.totalorder %s15, 1
      %p109 = por %p107, %p108
      %p110 = scmp.ne.s32.totalorder %s102, %s105
      %p111 = scmp.eq.s32.totalorder %s15, 0
      %p112 = por %p110, %p111
      %p113 = scmp.ne.s32.totalorder %s102, %s105
      %p114 = scmp.eq.s32.totalorder %s20, 1
      %p115 = por %p113, %p114
      %p116 = scmp.ne.s32.totalorder %s105, %s106
      %p117 = scmp.eq.s32.totalorder %s20, 0
      %p118 = por %p116, %p117
      %p119 = scmp.ne.s32.totalorder %s105, %s106
      %p120 = scmp.eq.s32.totalorder %s21, 1
      %p121 = por %p119, %p120
      %p123 = scmp.ne.s32.totalorder %s106, %s122
      %p124 = scmp.eq.s32.totalorder %s21, 0
      %p125 = por %p123, %p124
      %p126 = scmp.le.s32.totalorder 1, %s15
      %p127 = scmp.lt.s32.totalorder %s15, 3
      %p128 = pnand %p126, %p127
      %p129 = pneg %p128
      // Predicated region
      $region9: #{tpu_custom_call.1} parent=5 // pred_check
        _
      $region10: #{tpu_custom_call.1} parent=5 // pred_check_branch
        %131 = sbr.rel (%p128) target = $region12
      $region11: #{tpu_custom_call.1} parent=5 // pred_region
        %s132 = ssub.s32 %s15, 1
        // Predicated region
        $region13: #{tpu_custom_call.1} parent=11 // pred_check
          %p133 = pneg %p88
        $region14: #{tpu_custom_call.1} parent=11 // pred_check_branch
          %135 = sbr.rel (%p133) target = $region16
        $region15: #{tpu_custom_call.1} parent=11 // pred_region
          %s137 = ssub.s32 512, 512
          %138 = vsyncadd [#allocation6], %s137
          %s139 = smul.addr %s27, 64
          %s140 = scalar_lea.hbm %s1, %s139
          %s141 = sshll.u32 [#allocation5], 4
          %s142 = int_to_ptr.vmem [resolvable:$true] %s141
          %147 = dma.hbm_to_vmem [thread:$0]  %s140, 512, %s142, [#allocation6], 64, 64, 4
        $region16: #{tpu_custom_call.1} parent=11 // pred_fallthru
          _
      $region12: #{tpu_custom_call.1} parent=5 // pred_fallthru
        _
      %p148 = scmp.lt.s32.totalorder %s15, 2
      // Predicated region
      $region17: #{tpu_custom_call.1} parent=5 // pred_check
        %p149 = pneg %p148
      $region18: #{tpu_custom_call.1} parent=5 // pred_check_branch
        %151 = sbr.rel (%p149) target = $region20
      $region19: #{tpu_custom_call.1} parent=5 // pred_region
        // Predicated region
        $region21: #{tpu_custom_call.1} parent=19 // pred_check
          %p152 = pneg %p56
        $region22: #{tpu_custom_call.1} parent=19 // pred_check_branch
          %154 = sbr.rel (%p152) target = $region24
        $region23: #{tpu_custom_call.1} parent=19 // pred_region
          %s155 = sand.u32 %s46, 1
          %s156 = scalar_lea.sflag [#allocation3], %s155
          %s157 = sand.u32 %s46, 1
          %s158 = smul.addr %s157, 36
          %s159 = scalar_lea.vmem [#allocation2], %s158
          %s161 = ssub.s32 576, 576
          %162 = vsyncadd %s156, %s161
          %s163 = smul.addr %s23, 9
          %s164 = smul.addr %s22, 9
          %s165 = sadd.s32 %s163, %s164
          %s166 = smul.addr %s165, 64
          %s167 = scalar_lea.hbm %s0, %s166
          %s168 = sshll.u32 %s159, 4
          %s169 = int_to_ptr.vmem [resolvable:$true] %s168
          %174 = dma.hbm_to_vmem [thread:$0]  %s167, 576, %s169, %s156, 64, 64, 4
        $region24: #{tpu_custom_call.1} parent=19 // pred_fallthru
          _
      $region20: #{tpu_custom_call.1} parent=5 // pred_fallthru
        _
      %p175 = scmp.le.s32.totalorder 1, %s15
      %p176 = scmp.lt.s32.totalorder %s15, 3
      %p177 = pnand %p175, %p176
      %p178 = pneg %p177
      // Predicated region
      $region25: #{tpu_custom_call.1} parent=5 // pred_check
        _
      $region26: #{tpu_custom_call.1} parent=5 // pred_check_branch
        %180 = sbr.rel (%p177) target = $region28
      $region27: #{tpu_custom_call.1} parent=5 // pred_region
        %s181 = ssub.s32 %s15, 1
        %s182 = sand.u32 %s49, 1
        %s183 = scalar_lea.sflag [#allocation3], %s182
        %s184 = sand.u32 %s49, 1
        %s185 = smul.addr %s184, 36
        %s186 = scalar_lea.vmem [#allocation2], %s185
        // Predicated region
        $region29: #{tpu_custom_call.1} parent=27 // pred_check
          %p187 = pneg %p62
        $region30: #{tpu_custom_call.1} parent=27 // pred_check_branch
          %189 = sbr.rel (%p187) target = $region32
        $region31: #{tpu_custom_call.1} parent=27 // pred_region
          %190 = dma.done %s183, 576
        $region32: #{tpu_custom_call.1} parent=27 // pred_fallthru
          _
        // Predicated region
        $region33: #{tpu_custom_call.1} parent=27 // pred_check
          %p191 = pneg %p88
        $region34: #{tpu_custom_call.1} parent=27 // pred_check_branch
          %193 = sbr.rel (%p191) target = $region36
        $region35: #{tpu_custom_call.1} parent=27 // pred_region
          %194 = dma.done [#allocation6], 512
        $region36: #{tpu_custom_call.1} parent=27 // pred_fallthru
          _
        %s195 = sand.u32 %s49, 1
        %s196 = scalar_lea.sflag [#allocation3], %s195
        %s197 = sand.u32 %s49, 1
        %s198 = smul.addr %s197, 36
        %s199 = scalar_lea.vmem [#allocation2], %s198
        %p200 = pneg %p62
        %p201 = pneg %p59
        %p202 = pneg %p88
        %p203 = pneg %p85
        %p204 = pneg %p118
        %p205 = pneg %p115
        %s206 = sand.u32 %s105, 1
        %s207 = scalar_lea.sflag [#allocation4], %s206
        %s208 = sand.u32 %s105, 1
        %s209 = smul.addr %s208, 32
        %s210 = scalar_lea.vmem [#allocation7], %s209
        %s211 = smul.u32 8, %s26
        %v213 = vld [vmem:[%s186] sm:$0xf]
        %v214 = vld [vmem:[%s186 + $0x4] sm:$0xf]
        %v215 = vld [vmem:[%s186 + $0x8] sm:$0xf]
        %v216 = vld [vmem:[%s186 + $0xc] sm:$0xf]
        %v217 = vld [vmem:[%s186 + $0x10] sm:$0xf]
        %v218 = vld [vmem:[%s186 + $0x14] sm:$0xf]
        %v219 = vld [vmem:[%s186 + $0x18] sm:$0xf]
        %v220 = vld [vmem:[%s186 + $0x1c] sm:$0xf]
        %v221 = vld [vmem:[%s186 + $0x20] sm:$0xf]
        %v222 = vld [vmem:[#allocation5] sm:$0xf]
        %v223 = vld [vmem:[#allocation5 + $0x4] sm:$0xf]
        %v224 = vld [vmem:[#allocation5 + $0x8] sm:$0xf]
        %v225 = vld [vmem:[#allocation5 + $0xc] sm:$0xf]
        %s226 = scalar_lea.vmem [#allocation5], 16
        %v227 = vld [vmem:[%s226] sm:$0xf]
        %v228 = vld [vmem:[%s226 + $0x4] sm:$0xf]
        %v229 = vld [vmem:[%s226 + $0x8] sm:$0xf]
        %v230 = vld [vmem:[%s226 + $0xc] sm:$0xf]
        %v239 = vunpack.c.l.b16 %v214
        %v240 = vunpack.c.l.b16 %v215
        %v241 = vunpack.c.l.b16 %v216
        %v242 = vunpack.c.l.b16 %v217
        %v243 = vunpack.c.l.b16 %v218
        %v244 = vunpack.c.l.b16 %v219
        %v245 = vunpack.c.l.b16 %v220
        %v246 = vunpack.c.l.b16 %v221
        %v247 = vpack.c.b16 %v240, %v239
        %v248 = vpack.c.b16 %v242, %v241
        %v249 = vpack.c.b16 %v244, %v243
        %v250 = vpack.c.b16 %v246, %v245
        %v255 = vunpack.c.l.b16 %v227
        %v256 = vunpack.c.l.b16 %v228
        %v257 = vunpack.c.l.b16 %v229
        %v258 = vunpack.c.l.b16 %v230
        %v259 = vpack.c.b16 %v256, %v255
        %v260 = vpack.c.b16 %v258, %v257
        %vm263 = vcmask 261120
        %v265 = vsel %vm263, %v247, 0
        %v268 = vsel %vm263, %v248, 0
        %v271 = vsel %vm263, %v249, 0
        %v274 = vsel %vm263, %v250, 0
        %276 = vmatprep.subr.bf16.mxu0 0
        %277 = vmatpush1.bf16.msra.mxu0 0
        %278 = vmatprep.subr.bf16.mxu0 0
        %279 = vmatpush1.bf16.msra.mxu0 0
        %280 = vmatprep.subr.bf16.mxu0 0
        %281 = vmatpush1.bf16.msra.mxu0 0
        %282 = vmatprep.subr.bf16.mxu0 0
        %283 = vmatpush1.bf16.msra.mxu0 0
        %284 = vmatprep.subr.bf16.mxu0 0
        %285 = vmatpush1.bf16.msra.mxu0 0
        %286 = vmatprep.subr.bf16.mxu0 0
        %287 = vmatpush1.bf16.msra.mxu0 0
        %288 = vmatprep.subr.bf16.mxu0 0
        %289 = vmatpush1.bf16.msra.mxu0 %v260
        %290 = vmatprep.subr.bf16.mxu0 0
        %291 = vmatpush1.bf16.msra.mxu0 %v259
        %292 = vmatprep.subr.bf16.mxu0 0
        %293 = vmatpush2.bf16.msra.mxu0 0
        %294 = vmatprep.subr.bf16.mxu0 0
        %295 = vmatpush2.bf16.msra.mxu0 0
        %296 = vmatprep.subr.bf16.mxu0 0
        %297 = vmatpush2.bf16.msra.mxu0 0
        %298 = vmatprep.subr.bf16.mxu0 0
        %299 = vmatpush2.bf16.msra.mxu0 0
        %300 = vmatprep.subr.bf16.mxu0 0
        %301 = vmatpush2.bf16.msra.mxu0 0
        %302 = vmatprep.subr.bf16.mxu0 0
        %303 = vmatpush2.bf16.msra.mxu0 0
        %304 = vmatprep.subr.bf16.mxu0 0
        %305 = vmatpush2.bf16.msra.mxu0 0
        %306 = vmatprep.subr.bf16.mxu0 0
        %307 = vmatpush2.bf16.msra.mxu0 0
        %308 = vmatprep.mubr.bf16.mxu0 0
        %309 = vmatmul.mubr.bf16.gmra.mxu0 %v265
        %v310 = vpop.f32.mrf.mxu0
        %v311 = vadd.f32 0.0, %v310
        %v312 = vpop.f32.mrf.mxu0
        %v313 = vpop.f32.mrf.mxu0
        %v314 = vadd.f32 0.0, %v313
        %v315 = vpop.f32.mrf.mxu0
        %316 = vmatprep.mubr.bf16.mxu0 0
        %317 = vmatmul.mubr.bf16.gmra.mxu0 %v268
        %v318 = vpop.f32.mrf.mxu0
        %v319 = vadd.f32 0.0, %v318
        %v320 = vpop.f32.mrf.mxu0
        %v321 = vpop.f32.mrf.mxu0
        %v322 = vadd.f32 0.0, %v321
        %v323 = vpop.f32.mrf.mxu0
        %324 = vmatprep.mubr.bf16.mxu0 0
        %325 = vmatmul.mubr.bf16.gmra.mxu0 %v271
        %v326 = vpop.f32.mrf.mxu0
        %v327 = vadd.f32 0.0, %v326
        %v328 = vpop.f32.mrf.mxu0
        %v329 = vpop.f32.mrf.mxu0
        %v330 = vadd.f32 0.0, %v329
        %v331 = vpop.f32.mrf.mxu0
        %332 = vmatprep.mubr.bf16.mxu0 0
        %333 = vmatmul.mubr.bf16.gmra.mxu0 %v274
        %v334 = vpop.f32.mrf.mxu0
        %v335 = vadd.f32 0.0, %v334
        %v336 = vpop.f32.mrf.mxu0
        %v337 = vpop.f32.mrf.mxu0
        %v338 = vadd.f32 0.0, %v337
        %v339 = vpop.f32.mrf.mxu0
        %340 = vdwg.mxu0
        %v342 = vunpack.c.l.b16 %v213
        %v343 = vpack.c.b16 %v239, %v342
        %v344 = vpack.c.b16 %v241, %v240
        %v345 = vpack.c.b16 %v243, %v242
        %v346 = vpack.c.b16 %v245, %v244
        %v351 = vunpack.c.l.b16 %v222
        %v352 = vunpack.c.l.b16 %v223
        %v353 = vunpack.c.l.b16 %v224
        %v354 = vunpack.c.l.b16 %v225
        %v355 = vpack.c.b16 %v352, %v351
        %v356 = vpack.c.b16 %v354, %v353
        %v360 = vsel %vm263, %v343, 0
        %v363 = vsel %vm263, %v344, 0
        %v366 = vsel %vm263, %v345, 0
        %v369 = vsel %vm263, %v346, 0
        %371 = vmatprep.subr.bf16.mxu0 0
        %372 = vmatpush1.bf16.msra.mxu0 0
        %373 = vmatprep.subr.bf16.mxu0 0
        %374 = vmatpush1.bf16.msra.mxu0 0
        %375 = vmatprep.subr.bf16.mxu0 0
        %376 = vmatpush1.bf16.msra.mxu0 0
        %377 = vmatprep.subr.bf16.mxu0 0
        %378 = vmatpush1.bf16.msra.mxu0 0
        %379 = vmatprep.subr.bf16.mxu0 0
        %380 = vmatpush1.bf16.msra.mxu0 0
        %381 = vmatprep.subr.bf16.mxu0 0
        %382 = vmatpush1.bf16.msra.mxu0 0
        %383 = vmatprep.subr.bf16.mxu0 0
        %384 = vmatpush1.bf16.msra.mxu0 %v356
        %385 = vmatprep.subr.bf16.mxu0 0
        %386 = vmatpush1.bf16.msra.mxu0 %v355
        %387 = vmatprep.subr.bf16.mxu0 0
        %388 = vmatpush2.bf16.msra.mxu0 0
        %389 = vmatprep.subr.bf16.mxu0 0
        %390 = vmatpush2.bf16.msra.mxu0 0
        %391 = vmatprep.subr.bf16.mxu0 0
        %392 = vmatpush2.bf16.msra.mxu0 0
        %393 = vmatprep.subr.bf16.mxu0 0
        %394 = vmatpush2.bf16.msra.mxu0 0
        %395 = vmatprep.subr.bf16.mxu0 0
        %396 = vmatpush2.bf16.msra.mxu0 0
        %397 = vmatprep.subr.bf16.mxu0 0
        %398 = vmatpush2.bf16.msra.mxu0 0
        %399 = vmatprep.subr.bf16.mxu0 0
        %400 = vmatpush2.bf16.msra.mxu0 0
        %401 = vmatprep.subr.bf16.mxu0 0
        %402 = vmatpush2.bf16.msra.mxu0 0
        %403 = vmatprep.mubr.bf16.mxu0 0
        %404 = vmatmul.mubr.bf16.gmra.mxu0 %v360
        %v405 = vpop.f32.mrf.mxu0
        %v406 = vadd.f32 %v311, %v405
        %v407 = vpop.f32.mrf.mxu0
        %v408 = vpop.f32.mrf.mxu0
        %v409 = vadd.f32 %v314, %v408
        %v410 = vpop.f32.mrf.mxu0
        %411 = vmatprep.mubr.bf16.mxu0 0
        %412 = vmatmul.mubr.bf16.gmra.mxu0 %v363
        %v413 = vpop.f32.mrf.mxu0
        %v414 = vadd.f32 %v319, %v413
        %v415 = vpop.f32.mrf.mxu0
        %v416 = vpop.f32.mrf.mxu0
        %v417 = vadd.f32 %v322, %v416
        %v418 = vpop.f32.mrf.mxu0
        %419 = vmatprep.mubr.bf16.mxu0 0
        %420 = vmatmul.mubr.bf16.gmra.mxu0 %v366
        %v421 = vpop.f32.mrf.mxu0
        %v422 = vadd.f32 %v327, %v421
        %v423 = vpop.f32.mrf.mxu0
        %v424 = vpop.f32.mrf.mxu0
        %v425 = vadd.f32 %v330, %v424
        %v426 = vpop.f32.mrf.mxu0
        %427 = vmatprep.mubr.bf16.mxu0 0
        %428 = vmatmul.mubr.bf16.gmra.mxu0 %v369
        %v429 = vpop.f32.mrf.mxu0
        %v430 = vadd.f32 %v335, %v429
        %v431 = vpop.f32.mrf.mxu0
        %v432 = vpop.f32.mrf.mxu0
        %v433 = vadd.f32 %v338, %v432
        %v434 = vpop.f32.mrf.mxu0
        %435 = vdwg.mxu0
        %v436 = vmax.f32 %v406, 0.0
        %v437 = vmax.f32 %v409, 0.0
        %v438 = vmax.f32 %v414, 0.0
        %v439 = vmax.f32 %v417, 0.0
        %v440 = vmax.f32 %v422, 0.0
        %v441 = vmax.f32 %v425, 0.0
        %v442 = vmax.f32 %v430, 0.0
        %v443 = vmax.f32 %v433, 0.0
        %v444 = vpack.c.bf16 %v436, %v436
        %v445 = vpack.c.bf16 %v437, %v437
        %v446 = vpack.c.bf16 %v438, %v438
        %v447 = vpack.c.bf16 %v439, %v439
        %v448 = vpack.c.bf16 %v440, %v440
        %v449 = vpack.c.bf16 %v441, %v441
        %v450 = vpack.c.bf16 %v442, %v442
        %v451 = vpack.c.bf16 %v443, %v443
        %452 = vst [vmem:[%s210] sm:$0xf] %v444
        %453 = vst [vmem:[%s210 + $0x4] sm:$0xf] %v445
        %454 = vst [vmem:[%s210 + $0x8] sm:$0xf] %v446
        %455 = vst [vmem:[%s210 + $0xc] sm:$0xf] %v447
        %456 = vst [vmem:[%s210 + $0x10] sm:$0xf] %v448
        %457 = vst [vmem:[%s210 + $0x14] sm:$0xf] %v449
        %458 = vst [vmem:[%s210 + $0x18] sm:$0xf] %v450
        %459 = vst [vmem:[%s210 + $0x1c] sm:$0xf] %v451
        %s460 = sand.u32 %s105, 1
        %s461 = scalar_lea.sflag [#allocation4], %s460
        %s462 = sand.u32 %s105, 1
        %s463 = smul.addr %s462, 32
        %s464 = scalar_lea.vmem [#allocation7], %s463
        // Predicated region
        $region37: #{tpu_custom_call.1} parent=27 // pred_check
          %p465 = pneg %p115
        $region38: #{tpu_custom_call.1} parent=27 // pred_check_branch
          %467 = sbr.rel (%p465) target = $region40
        $region39: #{tpu_custom_call.1} parent=27 // pred_region
          %s468 = smul.u32 8, %s26
          %s470 = ssub.s32 512, 512
          %471 = vsyncadd %s461, %s470
          %s472 = sadd.s32 %s27, %s468
          %s473 = smul.addr %s25, 8
          %s474 = sadd.s32 %s472, %s473
          %s475 = smul.addr %s474, 64
          %s476 = scalar_lea.hbm %s2, %s475
          %s477 = sshll.u32 %s464, 4
          %s478 = int_to_ptr.vmem [resolvable:$true] %s477
          %483 = dma.vmem_to_hbm [thread:$0]  %s478, 512, %s476, %s461, 64, 64, 4
        $region40: #{tpu_custom_call.1} parent=27 // pred_fallthru
          _
      $region28: #{tpu_custom_call.1} parent=5 // pred_fallthru
        _
      %p484 = scmp.le.s32.totalorder 2, %s15
      // Predicated region
      $region41: #{tpu_custom_call.1} parent=5 // pred_check
        %p485 = pneg %p484
      $region42: #{tpu_custom_call.1} parent=5 // pred_check_branch
        %487 = sbr.rel (%p485) target = $region44
      $region43: #{tpu_custom_call.1} parent=5 // pred_region
        %s488 = ssub.s32 %s15, 2
        // Predicated region
        $region45: #{tpu_custom_call.1} parent=43 // pred_check
          %p489 = pneg %p121
        $region46: #{tpu_custom_call.1} parent=43 // pred_check_branch
          %491 = sbr.rel (%p489) target = $region48
        $region47: #{tpu_custom_call.1} parent=43 // pred_region
          %s492 = sand.u32 %s106, 1
          %s493 = scalar_lea.sflag [#allocation4], %s492
          %s494 = sand.u32 %s106, 1
          %s495 = smul.addr %s494, 32
          %s496 = scalar_lea.vmem [#allocation7], %s495
          %497 = dma.done %s493, 512
        $region48: #{tpu_custom_call.1} parent=43 // pred_fallthru
          _
      $region44: #{tpu_custom_call.1} parent=5 // pred_fallthru
        _
    $region6: #{tpu_custom_call.1} parent=1 // loop_footer
      %s19 = sadd.s32 1, %s15
    $region7: #{tpu_custom_call.1} parent=1 // loop_footer_branch
      %14 = sbr.rel target = $region3
    $region8: #{tpu_custom_call.1} parent=1 // loop_exit
      _
    %498 = vsyncpa [#allocation3], 1
    %s499 = scalar_lea.sflag [#allocation3], 1
    %500 = vsyncpa %s499, 1
    %501 = vsyncpa [#allocation6], 1
    %502 = vsyncpa [#allocation4], 1
    %s503 = scalar_lea.sflag [#allocation4], 1
    %504 = vsyncpa %s503, 1

</llo_original>
